<compile_context>
chip_gen: v7x
topology: tpu7x:2x2x1
jax: 0.10.0
libtpu: 0.0.40
codegen_flags: <defaults>
</compile_context>

<pallas_src>
import functools

import jax
import jax.numpy as jnp
from jax import lax
from jax.experimental import pallas as pl
from jax.experimental.pallas import tpu as pltpu


def _pick_tile(n: int, max_tile: int = 256) -> int:
    """Largest tile that keeps Mosaic's (8, 128) block rules happy."""
    if n <= max_tile:
        return n                      # full-extent block is always legal
    for t in (256, 128, 64, 32, 16, 8):
        if n % t == 0:
            return t
    return n                          # fallback: single block


def _vmem_limit(bytes_needed: int) -> int:
    return int(min(max(2 * bytes_needed + (2 << 20), 8 << 20), 48 << 20))


# ---------------------------------------------------------------------------
# Stage 1: normalize + view-mean -> centroids
# ---------------------------------------------------------------------------
def _centroid_kernel(z_ref, c_ref):
    # z_ref: (V, tb, D); c_ref: (tb, D)
    z = z_ref[...].astype(jnp.float32)
    # F.normalize(z, p=2, dim=-1), eps = 1e-12 (PyTorch default)
    norm = jnp.sqrt(jnp.sum(z * z, axis=-1, keepdims=True))
    zn = z / jnp.maximum(norm, 1e-12)
    c_ref[...] = jnp.mean(zn, axis=0)


# ---------------------------------------------------------------------------
# Stage 2: pairwise uniformity + alignment
# ---------------------------------------------------------------------------
def _pairwise_kernel(ci_ref, cj_ref, out_ref, acc_e, acc_a, *, t: float, B: int):
    i = pl.program_id(0)
    j = pl.program_id(1)

    @pl.when((i == 0) & (j == 0))
    def _init():
        acc_e[...] = jnp.zeros_like(acc_e)
        acc_a[...] = jnp.zeros_like(acc_a)

    ci = ci_ref[...]                                        # (tp, D)
    cj = cj_ref[...]                                        # (tp, D)
    tp = ci.shape[0]

    sq_i = jnp.sum(ci * ci, axis=-1, keepdims=True)         # (tp, 1)
    sq_j = jnp.sum(cj * cj, axis=-1, keepdims=True)         # (tp, 1)

    # Gram tile on the MXU, contracting the feature axis of both operands:
    # no explicit transpose / second VMEM copy of the centroid tile.
    g = lax.dot_general(ci, cj, (((1,), (1,)), ((), ())),
                        preferred_element_type=jnp.float32)  # (tp, tp)

    # Clamp: the Gram identity can go slightly negative from MXU-vs-VPU rounding.
    d2 = jnp.maximum(sq_i + jnp.transpose(sq_j) - 2.0 * g, 0.0)
    e = jnp.exp(-t * d2)

    acc_e[...] += jnp.sum(e, keepdims=True)

    # Exact diagonal correction, only on the nb diagonal tiles (out of nb^2).
    @pl.when(i == j)
    def _sub_diag():
        rr = lax.broadcasted_iota(jnp.int32, (tp, tp), 0)
        cc = lax.broadcasted_iota(jnp.int32, (tp, tp), 1)
        acc_e[...] -= jnp.sum(jnp.where(rr == cc, e, 0.0), keepdims=True)

    # Alignment: accumulate ||c_i||^2 once per row tile.
    @pl.when(j == 0)
    def _acc_align():
        acc_a[...] += jnp.sum(sq_i, keepdims=True)

    @pl.when((i == pl.num_programs(0) - 1) & (j == pl.num_programs(1) - 1))
    def _finalize():
        # sum over ordered off-diagonal pairs / (B*(B-1)) == mean over torch.pdist pairs
        unif = jnp.log(acc_e[...] / float(B * (B - 1)))
        align = -(acc_a[...] / float(B))
        out_ref[:, 0:1] = unif
        out_ref[:, 1:2] = align


class DecoupledUniformityLossPallas:
    """JAX/Pallas port of DecoupledUniformityLoss (kernel=None path)."""

    def __init__(self, kernel: str = None, lambda_: float = 0.01, t: float = 2.0, **kernel_kwargs):
        # TODO(synk): the 'rbf'/'cosine' kernel + prior centroid path needs
        # (K + lambda*I)^-1 K (torch.inverse); no clean Pallas equivalent, so only the
        # default kernel=None forward path is implemented.
        assert kernel is None, "Only kernel=None path implemented in the Pallas port."
        self.t = float(t)
        self.lambda_ = lambda_
        self.metrics = {}

    def __call__(self, z, prior=None):
        B, V, D = z.shape
        assert B >= 2, "Need at least two samples for pairwise uniformity."

        # (B, V, D) -> (V, B, D): put the large B axis on sublanes (avoids the 2->8
        # sublane padding of the nviews axis) and lets stage 1 pipeline over B tiles.
        z_vbd = jnp.transpose(z, (1, 0, 2))

        tb = _pick_tile(B)
        nb1 = B // tb
        centroids = pl.pallas_call(
            _centroid_kernel,
            out_shape=jax.ShapeDtypeStruct((B, D), jnp.float32),
            grid_spec=pltpu.PrefetchScalarGridSpec(
                num_scalar_prefetch=0,
                grid=(nb1,),
                in_specs=[pl.BlockSpec((V, tb, D), lambda i: (0, i, 0))],
                out_specs=pl.BlockSpec((tb, D), lambda i: (i, 0)),
            ),
            compiler_params=pltpu.CompilerParams(
                dimension_semantics=("parallel",),
                vmem_limit_bytes=_vmem_limit(2 * (V * tb * D * 4 + tb * D * 4)),
            ),
            cost_estimate=pl.CostEstimate(
                flops=4 * B * V * D,
                transcendentals=B * V,
                bytes_accessed=B * V * D * 4 + B * D * 4,
            ),
        )(z_vbd)

        tp = _pick_tile(B)
        nb2 = B // tp
        kern = functools.partial(_pairwise_kernel, t=self.t, B=B)
        out = pl.pallas_call(
            kern,
            out_shape=jax.ShapeDtypeStruct((1, 2), jnp.float32),
            grid_spec=pltpu.PrefetchScalarGridSpec(
                num_scalar_prefetch=0,
                grid=(nb2, nb2),
                in_specs=[
                    pl.BlockSpec((tp, D), lambda i, j: (i, 0)),
                    pl.BlockSpec((tp, D), lambda i, j: (j, 0)),
                ],
                out_specs=pl.BlockSpec((1, 2), lambda i, j: (0, 0)),
                scratch_shapes=[
                    pltpu.VMEM((1, 1), jnp.float32),   # exp-sum accumulator
                    pltpu.VMEM((1, 1), jnp.float32),   # ||c||^2 accumulator
                ],
            ),
            compiler_params=pltpu.CompilerParams(
                dimension_semantics=("arbitrary", "arbitrary"),
                vmem_limit_bytes=_vmem_limit(4 * tp * D * 4 + 4 * tp * tp * 4),
            ),
            cost_estimate=pl.CostEstimate(
                flops=2 * B * B * D + 6 * B * B,
                transcendentals=B * B,
                bytes_accessed=2 * nb2 * B * D * 4 + 8,
            ),
        )(centroids, centroids)

        unif = out[0, 0]
        align = out[0, 1]
        self.metrics["unif"] = unif
        self.metrics["align"] = align
        return unif


def _reference(z, t):
    # Pure-JAX reference mirroring the PyTorch forward.
    z = z.astype(jnp.float32)
    zn = z / jnp.maximum(jnp.linalg.norm(z, axis=-1, keepdims=True), 1e-12)
    c = jnp.mean(zn, axis=1)
    B = c.shape[0]
    diff = c[:, None, :] - c[None, :, :]
    d2 = jnp.sum(diff * diff, axis=-1)
    iu = jnp.triu_indices(B, k=1)
    unif = jnp.log(jnp.mean(jnp.exp(-t * d2[iu])))
    align = -jnp.mean(jnp.sum(c * c, axis=-1))
    return unif, align


if __name__ == "__main__":
    key = jax.random.PRNGKey(0)
    bsize, nviews, feature_dim = 8, 2, 32
    z = jax.random.normal(key, (bsize, nviews, feature_dim), dtype=jnp.float32)

    loss_mod = DecoupledUniformityLossPallas(kernel=None, lambda_=0.01, t=2.0)
    unif = loss_mod(z)
    jax.block_until_ready(unif)

    ref_unif, ref_align = _reference(z, t=2.0)
    assert jnp.allclose(unif, ref_unif, atol=1e-5, rtol=1e-5), (unif, ref_unif)
    assert jnp.allclose(loss_mod.metrics["align"], ref_align, atol=1e-5, rtol=1e-5)

    print("KERNEL_OK")
</pallas_src>

<mosaic_0001>
module attributes {stable_mosaic.version = 11 : i64} {
  func.func @_centroid_kernel(%arg0: i32, %arg1: memref<2x8x32xf32, #tpu.memory_space<vmem>>, %arg2: memref<8x32xf32, #tpu.memory_space<vmem>>) attributes {dimension_semantics = [#tpu.dimension_semantics<parallel>], iteration_bounds = array<i64: 1>, scalar_prefetch = 0 : i64, scratch_operands = 0 : i64, tpu.core_type = #tpu.core_type<tc>, window_params = [{transform_indices = @transform_0, window_bounds = array<i64: 2, 8, 32>}, {transform_indices = @transform_1, window_bounds = array<i64: 8, 32>}]} {
    %c0 = arith.constant 0 : index
    %c0_0 = arith.constant 0 : index
    %c0_1 = arith.constant 0 : index
    %0 = vector.load %arg1[%c0, %c0_0, %c0_1] : memref<2x8x32xf32, #tpu.memory_space<vmem>>, vector<2x8x32xf32>
    %1 = arith.mulf %0, %0 : vector<2x8x32xf32>
    %cst = arith.constant dense<0.000000e+00> : vector<2x8xf32>
    %2 = vector.multi_reduction <add>, %1, %cst [2] : vector<2x8x32xf32> to vector<2x8xf32>
    %3 = vector.shape_cast %2 : vector<2x8xf32> to vector<2x8x1xf32>
    %4 = math.sqrt %3 : vector<2x8x1xf32>
    %cst_2 = arith.constant 9.99999996E-13 : f32
    %5 = vector.broadcast %cst_2 : f32 to vector<2x8x1xf32>
    %6 = arith.maximumf %4, %5 : vector<2x8x1xf32>
    %7 = vector.broadcast %6 : vector<2x8x1xf32> to vector<2x8x32xf32>
    %8 = arith.divf %0, %7 : vector<2x8x32xf32>
    %cst_3 = arith.constant dense<0.000000e+00> : vector<8x32xf32>
    %9 = vector.multi_reduction <add>, %8, %cst_3 [0] : vector<2x8x32xf32> to vector<8x32xf32>
    %cst_4 = arith.constant 2.000000e+00 : f32
    %10 = vector.broadcast %cst_4 : f32 to vector<8x32xf32>
    %11 = arith.divf %9, %10 : vector<8x32xf32>
    %c0_5 = arith.constant 0 : index
    %c0_6 = arith.constant 0 : index
    %12 = vector.load %arg2[%c0_5, %c0_6] : memref<8x32xf32, #tpu.memory_space<vmem>>, vector<8x32xf32>
    tpu.vector_store %arg2[%c0_5, %c0_6], %11 {strides = array<i32>} : memref<8x32xf32, #tpu.memory_space<vmem>>, vector<8x32xf32>,
    return
  }
  func.func @transform_0(%arg0: i32) -> (i32, i32, i32) {
    %c0_i32 = arith.constant 0 : i32
    %c0_i32_0 = arith.constant 0 : i32
    %c0_i32_1 = arith.constant 0 : i32
    return %c0_i32, %arg0, %c0_i32_0 : i32, i32, i32
  }
  func.func @transform_1(%arg0: i32) -> (i32, i32) {
    %c0_i32 = arith.constant 0 : i32
    %c0_i32_0 = arith.constant 0 : i32
    return %arg0, %c0_i32 : i32, i32
  }
}

</mosaic_0001>

<llo_original>
// kernel: tpu_custom_call.1
$region0: #{tpu_custom_call.1}
  #allocation0 [shape = 'u32[]', space=smem, size = 0x4, offset = 0x4, fixed_abs, tag = 'smem constant byte address 0x4 - core index']
  #allocation1 [shape = 'u32[144,128]{1,0:T(1,128)}', space=vmem, size = 0x12000, scoped, tag = 'internal scratch']
  %s0 = inlined_call_operand.hbm [shape: f32[2,8,32], index: 0, kind: input, shape index: {}]
  %s1 = inlined_call_operand.hbm [shape: f32[8,32], index: 1, kind: output, shape index: {}]
  %s2 = sld [smem:[#allocation0]]
  $region18: #{tpu_custom_call.1} parent=0
    _
  %s4 = ssub.s32 1, %s2
  %s5 = scalar_select 0, %s4, %s2
  $region1: #{tpu_custom_call.1} parent=0
    #allocation2 [shape = 'u8[8192]{0}', space=vmem, size = 0x2000, scoped, tag = 'input window, operand 0, single buffered']
    #allocation3 [shape = 's32[1]{0}', space=sflag, size = 0x4, scoped, tag = 'scoped memory for tpu_custom_call.1']
    #allocation4 [shape = 's32[1]{0}', space=sflag, size = 0x4, scoped, tag = 'scoped memory for tpu_custom_call.1']
    #allocation5 [shape = 'u8[4096]{0}', space=vmem, size = 0x1000, scoped, tag = 'output window, operand 0, single buffered']
    %6 = vsyncpa [#allocation3], 0
    %7 = vsyncpa [#allocation4], 0
    // Predicated region
    $region2: #{tpu_custom_call.1} parent=1 // pred_check
      _
    $region3: #{tpu_custom_call.1} parent=1 // pred_check_branch
      %9 = sbr.rel (0) target = $region5
    $region4: #{tpu_custom_call.1} parent=1 // pred_region
      %s11 = ssub.s32 256, 256
      %12 = vsyncadd [#allocation3], %s11
      %s13 = sshll.u32 [#allocation2], 4
      %s14 = int_to_ptr.vmem [resolvable:$true] %s13
      %19 = dma.hbm_to_vmem [thread:$0]  %s0, 256, %s14, [#allocation3], 128, 128, 8
    $region5: #{tpu_custom_call.1} parent=1 // pred_fallthru
      _
    // Predicated region
    $region6: #{tpu_custom_call.1} parent=1 // pred_check
      _
    $region7: #{tpu_custom_call.1} parent=1 // pred_check_branch
      %21 = sbr.rel (0) target = $region9
    $region8: #{tpu_custom_call.1} parent=1 // pred_region
      %22 = dma.done [#allocation3], 256
    $region9: #{tpu_custom_call.1} parent=1 // pred_fallthru
      _
    %v23 = vld [vmem:[#allocation2] sm:$0xff]
    %v24 = vld [vmem:[#allocation2 + $0x8] sm:$0xff]
    %v25 = vmul.f32 %v23, %v23
    %v26 = vmul.f32 %v24, %v24
    %vm27 = vcmask 261120
    %v28 = vsel %vm27, %v25, 0.0
    %29 = vadd.xlane.f32.xlu0 %v28
    %v30 = vpop.xlane.xlu0 %29
    %v31 = vsel %vm27, %v26, 0.0
    %32 = vadd.xlane.f32.xlu0 %v31
    %v33 = vpop.xlane.xlu0 %32
    %v34 = vrsqrt.pop %v30
    %v35 = vmul.f32 %v30, %v34
    %vm36 = vcmp.eq.f32.partialorder %v30, inf
    %v37 = vsel %vm36, %v30, %v35
    %vm38 = vcmp.eq.f32.partialorder %v30, 0.0
    %v39 = vand.u32 %v30, 2147483648
    %v40 = vsel %vm38, %v39, %v37
    %v41 = vrsqrt.pop %v33
    %v42 = vmul.f32 %v33, %v41
    %vm43 = vcmp.eq.f32.partialorder %v33, inf
    %v44 = vsel %vm43, %v33, %v42
    %vm45 = vcmp.eq.f32.partialorder %v33, 0.0
    %v46 = vand.u32 %v33, 2147483648
    %v47 = vsel %vm45, %v46, %v44
    %v48 = vmax.f32 %v40, 1e-12
    %v49 = vmax.f32 %v47, 1e-12
    %v50 = vrcp.pop %v48
    %v51 = vmul.f32 %v23, %v50
    %v52 = vrcp.pop %v49
    %v53 = vmul.f32 %v24, %v52
    %v54 = vsel %vm27, %v51, 0.0
    %v55 = vsel %vm27, %v53, 0.0
    %v56 = vadd.f32 %v54, %v55
    %v57 = vrcp.pop 2.0
    %v58 = vmul.f32 %v56, %v57
    %59 = vst.msk [vmem:[#allocation5] sm:$0xff] %vm27, %v58
    // Predicated region
    $region10: #{tpu_custom_call.1} parent=1 // pred_check
      _
    $region11: #{tpu_custom_call.1} parent=1 // pred_check_branch
      %61 = sbr.rel (0) target = $region13
    $region12: #{tpu_custom_call.1} parent=1 // pred_region
      %s63 = ssub.s32 128, 128
      %64 = vsyncadd [#allocation4], %s63
      %s66 = sshll.u32 [#allocation5], 4
      %s67 = int_to_ptr.vmem [resolvable:$true] %s66
      %69 = dma.vmem_to_hbm [thread:$0]  %s67, 128, %s1, [#allocation4]
    $region13: #{tpu_custom_call.1} parent=1 // pred_fallthru
      _
    // Predicated region
    $region14: #{tpu_custom_call.1} parent=1 // pred_check
      _
    $region15: #{tpu_custom_call.1} parent=1 // pred_check_branch
      %71 = sbr.rel (0) target = $region17
    $region16: #{tpu_custom_call.1} parent=1 // pred_region
      %72 = dma.done [#allocation4], 128
    $region17: #{tpu_custom_call.1} parent=1 // pred_fallthru
      _
    %73 = vsyncpa [#allocation3], 1
    %74 = vsyncpa [#allocation4], 1

</llo_original>
